<compile_context>
chip_gen: v7x
topology: tpu7x:2x2x1
jax: 0.10.0
libtpu: 0.0.40
codegen_flags: <defaults>
</compile_context>

<pallas_src>
import jax
import jax.numpy as jnp
from jax.experimental import pallas as pl
from jax.experimental.pallas import tpu as pltpu


def _round_up(x, m):
    return (x + m - 1) // m * m


# ---- fused sin/cos (shared range reduction, f32, pure VPU) -------------------
_TWO_OVER_PI = 0.6366197723675814
# Cody-Waite split of pi/2 (Cephes single-precision constants, each exact in f32)
_PI2_A = 1.5703125
_PI2_B = 4.837512969970703125e-4
_PI2_C = 7.54978995489188e-8


def _sincos_f32(x):
    """Return (sin(x), cos(x)) in f32 with one shared range reduction."""
    k = jnp.round(x * _TWO_OVER_PI)
    r = x - k * _PI2_A
    r = r - k * _PI2_B
    r = r - k * _PI2_C
    r2 = r * r
    # sin polynomial on [-pi/4, pi/4]
    ps = -1.9515295891e-4 * r2 + 8.3321608736e-3
    ps = ps * r2 - 1.6666654611e-1
    sin_r = ps * r2 * r + r
    # cos polynomial on [-pi/4, pi/4]
    pc = 2.443315711809948e-5 * r2 - 1.388731625493765e-3
    pc = pc * r2 + 4.166664568298827e-2
    cos_r = pc * r2 * r2 - 0.5 * r2 + 1.0
    # quadrant selection:  sin(x) = +-{sin,cos}(r),  cos(x) = +-{cos,sin}(r)
    q = k.astype(jnp.int32)
    swap = (q & 1) == 1
    sin_v = jnp.where(swap, cos_r, sin_r)
    cos_v = jnp.where(swap, sin_r, cos_r)
    sin_v = jnp.where((q & 2) == 2, -sin_v, sin_v)
    cos_v = jnp.where(((q + 1) & 2) == 2, -cos_v, cos_v)
    return sin_v, cos_v


def _make_kernel(H):
    lane_aligned = (H % 128 == 0)

    def kernel(pos_ref, freq_ref, out_ref):
        # pos_ref:  (TL, 1)   f32
        # freq_ref: (1,  H)   f32
        # out_ref:  (TL, 2*H) out dtype
        pos = pos_ref[...]
        freq = freq_ref[...]
        x = pos * freq                       # VPU broadcast outer product (TL, H)
        sin_v, cos_v = _sincos_f32(x)
        if lane_aligned:
            # Two unmasked lane-aligned stores; sin can retire before cos.
            out_ref[:, :H] = sin_v.astype(out_ref.dtype)
            out_ref[:, H:] = cos_v.astype(out_ref.dtype)
        else:
            out_ref[...] = jnp.concatenate([sin_v, cos_v], axis=-1).astype(out_ref.dtype)

    return kernel


def positional_embedding(pos_seq, inv_freq, *, out_dtype=jnp.float32,
                         tile_l=None, use_kernel=None):
    """pos_seq: [L] float, inv_freq: [demb//2] float -> [L, 1, demb] out_dtype."""
    L = pos_seq.shape[0]
    H = inv_freq.shape[0]
    demb = 2 * H

    # Tiny problems: pallas_call launch overhead dominates -> pure JAX.
    if use_kernel is None:
        use_kernel = (L * demb) >= (64 * 1024)
    if not use_kernel:
        s = pos_seq.astype(jnp.float32)[:, None] * inv_freq.astype(jnp.float32)[None, :]
        emb = jnp.concatenate([jnp.sin(s), jnp.cos(s)], axis=-1).astype(out_dtype)
        return emb[:, None, :]

    out_itemsize = jnp.dtype(out_dtype).itemsize
    # ~8 MiB output tile cap (double-buffered -> ~16 MiB, under the 32 MiB limit).
    vmem_cap_rows = (8 * 1024 * 1024) // (demb * out_itemsize)
    vmem_cap_rows = max(8, vmem_cap_rows - (vmem_cap_rows % 8))
    # Keep at least ~4 tiles when L allows it (v7x has 2 TensorCores; also keeps
    # the pipeline's compute/writeback overlap).
    target_rows = _round_up(pl.cdiv(L, 4), 8)
    TL = min(vmem_cap_rows, target_rows)
    if tile_l is not None:
        TL = min(TL, _round_up(tile_l, 8))
    TL = max(8, TL - (TL % 8))
    grid_l = pl.cdiv(L, TL)          # ragged last block handled by Pallas masking

    pos2d = pos_seq.astype(jnp.float32).reshape(L, 1)
    freq2d = inv_freq.astype(jnp.float32).reshape(1, H)

    cost = pl.CostEstimate(
        flops=L * H * 32,                # outer product + sincos polynomials (VPU)
        transcendentals=0,               # sin/cos do not use the EUP
        bytes_accessed=L * demb * out_itemsize + L * 4 + H * 4,
    )

    out = pl.pallas_call(
        _make_kernel(H),
        out_shape=jax.ShapeDtypeStruct((L, demb), out_dtype),
        grid=(grid_l,),
        in_specs=[
            pl.BlockSpec((TL, 1), lambda i: (i, 0)),   # per-tile positions (tiny)
            pl.BlockSpec((1, H), lambda i: (0, 0)),    # inv_freq stays resident
        ],
        out_specs=pl.BlockSpec((TL, demb), lambda i: (i, 0)),
        compiler_params=pltpu.CompilerParams(
            dimension_semantics=("parallel",),         # independent tiles -> megacore
            vmem_limit_bytes=32 * 1024 * 1024,
        ),
        cost_estimate=cost,
    )(pos2d, freq2d)

    return out[:, None, :]   # [L, 1, demb]  (pure metadata reshape)


if __name__ == "__main__":
    key = jax.random.PRNGKey(0)

    def ref_fn(pos_seq, inv_freq):
        s = pos_seq[:, None] * inv_freq[None, :]
        return jnp.concatenate([jnp.sin(s), jnp.cos(s)], axis=-1)[:, None, :]

    # Case 1: small shapes per the module spec (L=8, demb=32); force the Pallas
    # kernel so it is exercised even below the auto-dispatch threshold.
    L, demb = 8, 32
    inv_freq = 1.0 / (10000.0 ** (jnp.arange(0.0, demb, 2.0, dtype=jnp.float32) / demb))
    pos_seq = jax.random.uniform(key, (L,), dtype=jnp.float32, minval=0.0, maxval=16.0)
    out = jax.block_until_ready(positional_embedding(pos_seq, inv_freq, use_kernel=True))
    assert out.shape == (L, 1, demb), out.shape
    assert jnp.allclose(out, ref_fn(pos_seq, inv_freq), atol=1e-5, rtol=1e-5), "mismatch (small)"

    # Case 2: larger shape exercising the tiled grid with a ragged last block
    # (L not a multiple of the tile; multiple grid steps; lane-aligned H path).
    L2, demb2 = 300, 256
    inv_freq2 = 1.0 / (10000.0 ** (jnp.arange(0.0, demb2, 2.0, dtype=jnp.float32) / demb2))
    pos_seq2 = jnp.arange(L2 - 1, -1, -1, dtype=jnp.float32)   # Transformer-XL reversed arange
    out2 = jax.block_until_ready(
        positional_embedding(pos_seq2, inv_freq2, use_kernel=True))
    assert out2.shape == (L2, 1, demb2), out2.shape
    assert jnp.allclose(out2, ref_fn(pos_seq2, inv_freq2), atol=1e-5, rtol=1e-5), "mismatch (tiled)"

    print("KERNEL_OK")
</pallas_src>

<mosaic_0001>
module attributes {stable_mosaic.version = 11 : i64} {
  func.func @kernel(%arg0: i32, %arg1: memref<8x1xf32, #tpu.memory_space<vmem>>, %arg2: memref<1x16xf32, #tpu.memory_space<vmem>>, %arg3: memref<8x32xf32, #tpu.memory_space<vmem>>) attributes {dimension_semantics = [#tpu.dimension_semantics<parallel>], iteration_bounds = array<i64: 1>, scalar_prefetch = 0 : i64, scratch_operands = 0 : i64, tpu.core_type = #tpu.core_type<tc>, window_params = [{transform_indices = @transform_0, window_bounds = array<i64: 8, 1>}, {pipeline_mode = #tpu.pipeline_mode<synchronous>, transform_indices = @transform_1, window_bounds = array<i64: 1, 16>}, {transform_indices = @transform_2, window_bounds = array<i64: 8, 32>}]} {
    %c0 = arith.constant 0 : index
    %c0_0 = arith.constant 0 : index
    %0 = vector.load %arg1[%c0, %c0_0] : memref<8x1xf32, #tpu.memory_space<vmem>>, vector<8x1xf32>
    %c0_1 = arith.constant 0 : index
    %c0_2 = arith.constant 0 : index
    %1 = vector.load %arg2[%c0_1, %c0_2] : memref<1x16xf32, #tpu.memory_space<vmem>>, vector<1x16xf32>
    %2 = vector.broadcast %0 : vector<8x1xf32> to vector<8x16xf32>
    %3 = vector.broadcast %1 : vector<1x16xf32> to vector<8x16xf32>
    %4 = arith.mulf %2, %3 : vector<8x16xf32>
    %cst = arith.constant 0.636619746 : f32
    %5 = vector.broadcast %cst : f32 to vector<8x16xf32>
    %6 = arith.mulf %4, %5 : vector<8x16xf32>
    %7 = math.roundeven %6 : vector<8x16xf32>
    %cst_3 = arith.constant 1.5703125 : f32
    %8 = vector.broadcast %cst_3 : f32 to vector<8x16xf32>
    %9 = arith.mulf %7, %8 : vector<8x16xf32>
    %10 = arith.subf %4, %9 : vector<8x16xf32>
    %cst_4 = arith.constant 4.83751297E-4 : f32
    %11 = vector.broadcast %cst_4 : f32 to vector<8x16xf32>
    %12 = arith.mulf %7, %11 : vector<8x16xf32>
    %13 = arith.subf %10, %12 : vector<8x16xf32>
    %cst_5 = arith.constant 7.549790e-08 : f32
    %14 = vector.broadcast %cst_5 : f32 to vector<8x16xf32>
    %15 = arith.mulf %7, %14 : vector<8x16xf32>
    %16 = arith.subf %13, %15 : vector<8x16xf32>
    %17 = arith.mulf %16, %16 : vector<8x16xf32>
    %cst_6 = arith.constant -1.95152956E-4 : f32
    %18 = vector.broadcast %cst_6 : f32 to vector<8x16xf32>
    %19 = arith.mulf %18, %17 : vector<8x16xf32>
    %cst_7 = arith.constant 0.00833216123 : f32
    %20 = vector.broadcast %cst_7 : f32 to vector<8x16xf32>
    %21 = arith.addf %19, %20 : vector<8x16xf32>
    %22 = arith.mulf %21, %17 : vector<8x16xf32>
    %cst_8 = arith.constant 0.166666552 : f32
    %23 = vector.broadcast %cst_8 : f32 to vector<8x16xf32>
    %24 = arith.subf %22, %23 : vector<8x16xf32>
    %25 = arith.mulf %24, %17 : vector<8x16xf32>
    %26 = arith.mulf %25, %16 : vector<8x16xf32>
    %27 = arith.addf %26, %16 : vector<8x16xf32>
    %cst_9 = arith.constant 2.44331568E-5 : f32
    %28 = vector.broadcast %cst_9 : f32 to vector<8x16xf32>
    %29 = arith.mulf %28, %17 : vector<8x16xf32>
    %cst_10 = arith.constant 0.00138873165 : f32
    %30 = vector.broadcast %cst_10 : f32 to vector<8x16xf32>
    %31 = arith.subf %29, %30 : vector<8x16xf32>
    %32 = arith.mulf %31, %17 : vector<8x16xf32>
    %cst_11 = arith.constant 0.0416666456 : f32
    %33 = vector.broadcast %cst_11 : f32 to vector<8x16xf32>
    %34 = arith.addf %32, %33 : vector<8x16xf32>
    %35 = arith.mulf %34, %17 : vector<8x16xf32>
    %36 = arith.mulf %35, %17 : vector<8x16xf32>
    %cst_12 = arith.constant 5.000000e-01 : f32
    %37 = vector.broadcast %cst_12 : f32 to vector<8x16xf32>
    %38 = arith.mulf %37, %17 : vector<8x16xf32>
    %39 = arith.subf %36, %38 : vector<8x16xf32>
    %cst_13 = arith.constant 1.000000e+00 : f32
    %40 = vector.broadcast %cst_13 : f32 to vector<8x16xf32>
    %41 = arith.addf %39, %40 : vector<8x16xf32>
    %42 = arith.fptosi %7 : vector<8x16xf32> to vector<8x16xi32>
    %c1_i32 = arith.constant 1 : i32
    %43 = vector.broadcast %c1_i32 : i32 to vector<8x16xi32>
    %44 = arith.andi %42, %43 : vector<8x16xi32>
    %c1_i32_14 = arith.constant 1 : i32
    %45 = vector.broadcast %c1_i32_14 : i32 to vector<8x16xi32>
    %46 = arith.cmpi eq, %44, %45 : vector<8x16xi32>
    %47 = arith.select %46, %41, %27 : vector<8x16xi1>, vector<8x16xf32>
    %48 = arith.select %46, %27, %41 : vector<8x16xi1>, vector<8x16xf32>
    %c2_i32 = arith.constant 2 : i32
    %49 = vector.broadcast %c2_i32 : i32 to vector<8x16xi32>
    %50 = arith.andi %42, %49 : vector<8x16xi32>
    %c2_i32_15 = arith.constant 2 : i32
    %51 = vector.broadcast %c2_i32_15 : i32 to vector<8x16xi32>
    %52 = arith.cmpi eq, %50, %51 : vector<8x16xi32>
    %cst_16 = arith.constant 0.000000e+00 : f32
    %53 = vector.broadcast %cst_16 : f32 to vector<8x16xf32>
    %54 = arith.subf %53, %47 : vector<8x16xf32>
    %55 = arith.select %52, %54, %47 : vector<8x16xi1>, vector<8x16xf32>
    %c1_i32_17 = arith.constant 1 : i32
    %56 = vector.broadcast %c1_i32_17 : i32 to vector<8x16xi32>
    %57 = arith.addi %42, %56 : vector<8x16xi32>
    %c2_i32_18 = arith.constant 2 : i32
    %58 = vector.broadcast %c2_i32_18 : i32 to vector<8x16xi32>
    %59 = arith.andi %57, %58 : vector<8x16xi32>
    %c2_i32_19 = arith.constant 2 : i32
    %60 = vector.broadcast %c2_i32_19 : i32 to vector<8x16xi32>
    %61 = arith.cmpi eq, %59, %60 : vector<8x16xi32>
    %cst_20 = arith.constant 0.000000e+00 : f32
    %62 = vector.broadcast %cst_20 : f32 to vector<8x16xf32>
    %63 = arith.subf %62, %48 : vector<8x16xf32>
    %64 = arith.select %61, %63, %48 : vector<8x16xi1>, vector<8x16xf32>
    %65 = tpu.concatenate %55, %64 in 1 : vector<8x16xf32>, vector<8x16xf32> -> vector<8x32xf32>
    %c0_21 = arith.constant 0 : index
    %c0_22 = arith.constant 0 : index
    %66 = vector.load %arg3[%c0_21, %c0_22] : memref<8x32xf32, #tpu.memory_space<vmem>>, vector<8x32xf32>
    tpu.vector_store %arg3[%c0_21, %c0_22], %65 {strides = array<i32>} : memref<8x32xf32, #tpu.memory_space<vmem>>, vector<8x32xf32>,
    return
  }
  func.func @transform_0(%arg0: i32) -> (i32, i32) {
    %c0_i32 = arith.constant 0 : i32
    %c0_i32_0 = arith.constant 0 : i32
    return %arg0, %c0_i32 : i32, i32
  }
  func.func @transform_1(%arg0: i32) -> (i32, i32) {
    %c0_i32 = arith.constant 0 : i32
    %c0_i32_0 = arith.constant 0 : i32
    %c0_i32_1 = arith.constant 0 : i32
    return %c0_i32, %c0_i32_0 : i32, i32
  }
  func.func @transform_2(%arg0: i32) -> (i32, i32) {
    %c0_i32 = arith.constant 0 : i32
    %c0_i32_0 = arith.constant 0 : i32
    return %arg0, %c0_i32 : i32, i32
  }
}

</mosaic_0001>

<llo_original>
// kernel: tpu_custom_call.1
$region0: #{tpu_custom_call.1}
  #allocation0 [shape = 'u32[]', space=smem, size = 0x4, offset = 0x4, fixed_abs, tag = 'smem constant byte address 0x4 - core index']
  #allocation1 [shape = 'u32[144,128]{1,0:T(1,128)}', space=vmem, size = 0x12000, scoped, tag = 'internal scratch']
  %s0 = inlined_call_operand.vmem [shape: f32[8,1], index: 0, kind: input, shape index: {}]
  %s1 = inlined_call_operand.vmem [shape: f32[1,16], index: 1, kind: input, shape index: {}]
  %s2 = inlined_call_operand.hbm [shape: f32[8,32], index: 2, kind: output, shape index: {}]
  %s3 = sld [smem:[#allocation0]]
  $region18: #{tpu_custom_call.1} parent=0
    _
  %s5 = ssub.s32 1, %s3
  %s6 = scalar_select 0, %s5, %s3
  $region1: #{tpu_custom_call.1} parent=0
    #allocation2 [shape = 'u8[4096]{0}', space=vmem, size = 0x1000, scoped, tag = 'output window, operand 0, single buffered']
    #allocation3 [shape = 's32[1]{0}', space=sflag, size = 0x4, scoped, tag = 'scoped memory for tpu_custom_call.1']
    %7 = vsyncpa [#allocation3], 0
    // Predicated region
    $region2: #{tpu_custom_call.1} parent=1 // pred_check
      _
    $region3: #{tpu_custom_call.1} parent=1 // pred_check_branch
      %9 = sbr.rel (0) target = $region5
    $region4: #{tpu_custom_call.1} parent=1 // pred_region
      _
    $region5: #{tpu_custom_call.1} parent=1 // pred_fallthru
      _
    // Predicated region
    $region6: #{tpu_custom_call.1} parent=1 // pred_check
      _
    $region7: #{tpu_custom_call.1} parent=1 // pred_check_branch
      %11 = sbr.rel (0) target = $region9
    $region8: #{tpu_custom_call.1} parent=1 // pred_region
      _
    $region9: #{tpu_custom_call.1} parent=1 // pred_fallthru
      _
    %v12 = vld [vmem:[%s0] sm:$0xff]
    %v13 = vld [vmem:[%s1] sm:$0x1]
    %15 = vset.pattern.permute.xlu0 0
    %16 = vperm.xlu0 %15, %v12
    %v17 = vpop.permute.xlu0 %16
    %v20 = vlaneseq
    %v21 = vshrl.u32 %v20, 7
    %v22 = vsub.s32 0, %v21
    %v23 = vrot.slane %v13, %v22
    %v25 = vmul.f32 %v17, %v23
    %v26 = vmul.f32 %v25, 0.63661975
    %v27 = vround.ne.pseudo %v26
    %v28 = vmul.f32 %v27, 1.5703125
    %v29 = vsub.f32 %v25, %v28
    %v30 = vmul.f32 %v27, 0.0004837513
    %v31 = vsub.f32 %v29, %v30
    %v32 = vmul.f32 %v27, 7.54979e-08
    %v33 = vsub.f32 %v31, %v32
    %v34 = vmul.f32 %v33, %v33
    %v35 = vmul.f32 %v34, -0.00019515296
    %v36 = vadd.f32 %v35, 0.008332161
    %v37 = vmul.f32 %v36, %v34
    %v38 = vsub.f32 %v37, 0.16666655
    %v39 = vmul.f32 %v38, %v34
    %v40 = vmul.f32 %v39, %v33
    %v41 = vadd.f32 %v40, %v33
    %v42 = vmul.f32 %v34, 2.4433157e-05
    %v43 = vsub.f32 %v42, 0.0013887316
    %v44 = vmul.f32 %v43, %v34
    %v45 = vadd.f32 %v44, 0.041666646
    %v46 = vmul.f32 %v45, %v34
    %v47 = vmul.f32 %v46, %v34
    %v48 = vmul.f32 %v34, 0.5
    %v49 = vsub.f32 %v47, %v48
    %v50 = vadd.f32 %v49, 1.0
    %v51 = vcvt.f32.s32.ties.to.even %v26
    %v52 = vand.u32 %v51, 1
    %vm53 = vcmp.eq.s32.totalorder %v52, 1
    %v54 = vsel %vm53, %v50, %v41
    %v55 = vsel %vm53, %v41, %v50
    %v56 = vand.u32 %v51, 2
    %vm57 = vcmp.eq.s32.totalorder %v56, 2
    %v58 = vsub.f32 0.0, %v54
    %v59 = vsel %vm57, %v58, %v54
    %v60 = vadd.s32 %v51, 1
    %v61 = vand.u32 %v60, 2
    %vm62 = vcmp.eq.s32.totalorder %v61, 2
    %v63 = vsub.f32 0.0, %v55
    %v64 = vsel %vm62, %v63, %v55
    %66 = vrot.lane.b32.xlu0 %v64, 16
    %v67 = vpop.permute.xlu0 %66
    %vm69 = vcmask 130048
    %v70 = vsel %vm69, %v59, %v67
    %vm71 = vcmask 261120
    %72 = vst.msk [vmem:[#allocation2] sm:$0xff] %vm71, %v70
    // Predicated region
    $region10: #{tpu_custom_call.1} parent=1 // pred_check
      _
    $region11: #{tpu_custom_call.1} parent=1 // pred_check_branch
      %74 = sbr.rel (0) target = $region13
    $region12: #{tpu_custom_call.1} parent=1 // pred_region
      %s76 = ssub.s32 128, 128
      %77 = vsyncadd [#allocation3], %s76
      %s79 = sshll.u32 [#allocation2], 4
      %s80 = int_to_ptr.vmem [resolvable:$true] %s79
      %82 = dma.vmem_to_hbm [thread:$0]  %s80, 128, %s2, [#allocation3]
    $region13: #{tpu_custom_call.1} parent=1 // pred_fallthru
      _
    // Predicated region
    $region14: #{tpu_custom_call.1} parent=1 // pred_check
      _
    $region15: #{tpu_custom_call.1} parent=1 // pred_check_branch
      %84 = sbr.rel (0) target = $region17
    $region16: #{tpu_custom_call.1} parent=1 // pred_region
      %85 = dma.done [#allocation3], 128
    $region17: #{tpu_custom_call.1} parent=1 // pred_fallthru
      _
    %86 = vsyncpa [#allocation3], 1

</llo_original>
